<compile_context>
chip_gen: v7x
topology: tpu7x:2x2x1
jax: 0.10.0
libtpu: 0.0.40
codegen_flags: <defaults>
</compile_context>

<pallas_src>
import functools

import jax
import jax.numpy as jnp
from jax import lax
from jax.experimental import pallas as pl
from jax.experimental.pallas import tpu as pltpu


def _nll_loss_kernel(x_ref, tgt_ref, out_ref, acc_ref, *,
                     epsilon: float, num_classes: int, batch: int,
                     block_rows: int, steps_per_split: int):
    # x_ref:   (TB, K)     logits tile (native dtype; cast to f32 in-kernel)
    # tgt_ref: (TB, 1)     int32 labels tile
    # out_ref: (1, 8, 128) f32 per-split partial-sum block (written once per split)
    # acc_ref: (1,)        f32 SMEM running sum for this split
    c = pl.program_id(0)          # split (parallel -> own TensorCore on v7x)
    i = pl.program_id(1)          # batch-tile step within the split (serial)

    @pl.when(i == 0)
    def _init():
        acc_ref[0] = jnp.float32(0.0)

    x = x_ref[...].astype(jnp.float32)
    tb, k = x.shape

    # Stable log-softmax pieces.  Neither p nor log_p is materialized:
    #   log_p = shifted - log(denom);  sum_k p_k == 1.
    x_max = jnp.max(x, axis=1, keepdims=True)
    shifted = x - x_max
    denom = jnp.sum(jnp.exp(shifted), axis=1, keepdims=True)     # (TB, 1)
    log_denom = jnp.log(denom)                                   # (TB, 1)

    # One-hot select from a (1, K) lane iota broadcast against (TB, 1) labels,
    # selecting on `shifted` (already live) -> no TB x K int32 temporary.
    cls_ids = lax.broadcasted_iota(jnp.int32, (1, k), 1)
    onehot = cls_ids == tgt_ref[...]                             # (TB, K) bool
    tgt_logp = jnp.sum(jnp.where(onehot, shifted, 0.0),
                       axis=1, keepdims=True) - log_denom        # (TB, 1)

    # sum_k p_k == 1, so the original "inputs" term contributes exactly 1 per row.
    loss_row = 1.0 - (1.0 - epsilon) * tgt_logp                  # (TB, 1)
    if epsilon != 0.0:                                           # static (compile-time) branch
        sum_logp = (jnp.sum(shifted, axis=1, keepdims=True)
                    - jnp.float32(num_classes) * log_denom)
        loss_row = loss_row - (epsilon / num_classes) * sum_logp

    # Mask rows past the end of the batch (partial last tile / clamped duplicate
    # overflow tile).  Select (not multiply) so OOB NaN/Inf is discarded.
    row0 = (c * steps_per_split + i) * block_rows
    row_ids = lax.broadcasted_iota(jnp.int32, (tb, 1), 0) + row0
    loss_row = jnp.where(row_ids < batch, loss_row, 0.0)

    acc_ref[0] += jnp.sum(loss_row)

    @pl.when(i == pl.num_programs(1) - 1)
    def _finalize():
        # Lane-dense unmasked store of the split's partial; wrapper reads [c, 0, 0].
        out_ref[...] = jnp.full(out_ref.shape, acc_ref[0], jnp.float32)


def negative_log_loss(inputs, targets, *, epsilon=0.1, label_smooth=True,
                      block_rows=None, num_splits=2):
    """inputs: (B, K) logits (any float dtype); targets: (B,) int labels -> scalar f32."""
    b, k = inputs.shape
    eps = float(epsilon) if label_smooth else 0.0
    tgt2d = targets.astype(jnp.int32).reshape(b, 1)

    itemsize = jnp.dtype(inputs.dtype).itemsize
    # Sub-32-bit dtypes pack along sublanes: round rows to 8 (f32) / 16 (bf16) / 32 (int8).
    row_pack = max(8, 32 // itemsize)

    if block_rows is None:
        # Size the tile by TOTAL live VMEM, not just the logits buffer:
        #   2x input tile (double-buffered DMA) + ~4 full-tile f32 temporaries
        #   (f32 cast, shifted, exp, masked select).  A 24 MiB budget keeps the
        #   kernel inside v7x's 64 MiB physical VMEM and under the 48 MiB limit set
        #   below (which also covers v5e's 16 MiB scoped default being too small).
        per_row_bytes = 2 * k * itemsize + 4 * k * 4
        block_rows = max(row_pack, (24 * 1024 * 1024) // max(1, per_row_bytes))

    if block_rows >= b:
        tb = b                                        # full-extent block: no (8,128) constraint
    else:
        tb = max(row_pack, (block_rows // row_pack) * row_pack)

    num_tiles = pl.cdiv(b, tb)
    splits = max(1, min(int(num_splits), num_tiles))  # >1 only pays off on multi-TC chips (v7x)
    steps_per_split = pl.cdiv(num_tiles, splits)

    def row_tile_map(c, i):
        # Clamp so overflow tiles of the last split never DMA fully out of bounds;
        # the in-kernel row mask zeroes their (duplicate) contribution.
        return (jnp.minimum(c * steps_per_split + i, num_tiles - 1), 0)

    kernel = functools.partial(_nll_loss_kernel, epsilon=eps, num_classes=k,
                               batch=b, block_rows=tb, steps_per_split=steps_per_split)
    partials = pl.pallas_call(
        kernel,
        out_shape=jax.ShapeDtypeStruct((splits, 8, 128), jnp.float32),
        grid=(splits, steps_per_split),
        in_specs=[
            pl.BlockSpec((tb, k), row_tile_map),      # logits in native dtype (no wrapper cast)
            pl.BlockSpec((tb, 1), row_tile_map),      # int32 labels
        ],
        out_specs=pl.BlockSpec((1, 8, 128), lambda c, i: (c, 0, 0)),
        scratch_shapes=[pltpu.SMEM((1,), jnp.float32)],
        compiler_params=pltpu.CompilerParams(
            dimension_semantics=("parallel", "arbitrary"),
            vmem_limit_bytes=48 * 1024 * 1024),
    )(inputs, tgt2d)
    return jnp.sum(partials[:, 0, 0]) * jnp.float32(1.0 / b)


def _reference(inputs, targets, *, epsilon=0.1, label_smooth=True):
    b, k = inputs.shape
    eps = epsilon if label_smooth else 0.0
    p = jax.nn.softmax(inputs.astype(jnp.float32), axis=1)
    t = jax.nn.one_hot(targets, k, dtype=jnp.float32)
    t = (1.0 - eps) * t + eps / k
    loss = p - t * jnp.log(p + 1e-8)
    return loss.mean(axis=0).sum()


if __name__ == "__main__":
    key = jax.random.PRNGKey(0)
    k1, k2, k3, k4, k5, k6 = jax.random.split(key, 6)

    # 1) small single-tile case (B=8, K=32), f32 logits, default tiling
    B, K = 8, 32
    logits = jax.random.normal(k1, (B, K), dtype=jnp.float32)
    labels = jax.random.randint(k2, (B,), 0, K, dtype=jnp.int32)
    out = jax.block_until_ready(negative_log_loss(logits, labels))
    ref = _reference(logits, labels)
    assert jnp.allclose(out, ref, rtol=1e-5, atol=1e-5), (out, ref)

    # 2) bf16 logits, two splits, partial last tile (B=20, rows rounded to bf16 pack=16)
    B2, K2 = 20, 32
    logits2 = jax.random.normal(k3, (B2, K2), dtype=jnp.float32).astype(jnp.bfloat16)
    labels2 = jax.random.randint(k4, (B2,), 0, K2, dtype=jnp.int32)
    out2 = jax.block_until_ready(negative_log_loss(logits2, labels2, block_rows=8))
    ref2 = _reference(logits2.astype(jnp.float32), labels2)
    assert jnp.allclose(out2, ref2, rtol=1e-4, atol=1e-4), (out2, ref2)

    # 3) odd tile count (5 tiles over 2 splits) -> exercises the clamped duplicate
    #    overflow tile of split 1; label smoothing disabled (epsilon = 0 path)
    B3, K3 = 40, 32
    logits3 = jax.random.normal(k5, (B3, K3), dtype=jnp.float32)
    labels3 = jax.random.randint(k6, (B3,), 0, K3, dtype=jnp.int32)
    out3 = jax.block_until_ready(
        negative_log_loss(logits3, labels3, label_smooth=False, block_rows=8))
    ref3 = _reference(logits3, labels3, label_smooth=False)
    assert jnp.allclose(out3, ref3, rtol=1e-5, atol=1e-5), (out3, ref3)

    print("KERNEL_OK")
</pallas_src>

<mosaic_0001>
module attributes {stable_mosaic.version = 11 : i64} {
  func.func @_nll_loss_kernel(%arg0: i32, %arg1: i32, %arg2: memref<8x32xf32, #tpu.memory_space<vmem>>, %arg3: memref<8x1xi32, #tpu.memory_space<vmem>>, %arg4: memref<1x8x128xf32, #tpu.memory_space<vmem>>, %arg5: memref<1xf32, #tpu.memory_space<smem>>) attributes {dimension_semantics = [#tpu.dimension_semantics<parallel>, #tpu.dimension_semantics<arbitrary>], iteration_bounds = array<i64: 1, 1>, scalar_prefetch = 0 : i64, scratch_operands = 1 : i64, tpu.core_type = #tpu.core_type<tc>, window_params = [{transform_indices = @transform_0, window_bounds = array<i64: 8, 32>}, {transform_indices = @transform_1, window_bounds = array<i64: 8, 1>}, {transform_indices = @transform_2, window_bounds = array<i64: 1, 8, 128>}]} {
    %c0_i32 = arith.constant 0 : i32
    %0 = arith.cmpi eq, %arg1, %c0_i32 : i32
    %1 = arith.extui %0 : i1 to i32
    %c0_i32_0 = arith.constant 0 : i32
    %2 = arith.cmpi ne, %1, %c0_i32_0 : i32
    scf.if %2 {
      %cst_19 = arith.constant 0.000000e+00 : f32
      %c0_20 = arith.constant 0 : index
      %54 = memref.load %arg5[%c0_20] : memref<1xf32, #tpu.memory_space<smem>>
      memref.store %cst_19, %arg5[%c0_20] : memref<1xf32, #tpu.memory_space<smem>>
    } else {
    }
    %c0 = arith.constant 0 : index
    %c0_1 = arith.constant 0 : index
    %3 = vector.load %arg2[%c0, %c0_1] : memref<8x32xf32, #tpu.memory_space<vmem>>, vector<8x32xf32>
    %cst = arith.constant dense<0xFF800000> : vector<8xf32>
    %4 = vector.multi_reduction <maximumf>, %3, %cst [1] : vector<8x32xf32> to vector<8xf32>
    %5 = vector.shape_cast %4 : vector<8xf32> to vector<8x1xf32>
    %6 = vector.broadcast %5 : vector<8x1xf32> to vector<8x32xf32>
    %7 = arith.subf %3, %6 : vector<8x32xf32>
    %8 = math.exp %7 : vector<8x32xf32>
    %cst_2 = arith.constant dense<0.000000e+00> : vector<8xf32>
    %9 = vector.multi_reduction <add>, %8, %cst_2 [1] : vector<8x32xf32> to vector<8xf32>
    %10 = vector.shape_cast %9 : vector<8xf32> to vector<8x1xf32>
    %11 = math.log %10 : vector<8x1xf32>
    %12 = tpu.iota {dimensions = array<i32: 1>} : vector<1x32xi32>
    %c0_3 = arith.constant 0 : index
    %c0_4 = arith.constant 0 : index
    %13 = vector.load %arg3[%c0_3, %c0_4] : memref<8x1xi32, #tpu.memory_space<vmem>>, vector<8x1xi32>
    %14 = vector.broadcast %12 : vector<1x32xi32> to vector<8x32xi32>
    %15 = vector.broadcast %13 : vector<8x1xi32> to vector<8x32xi32>
    %16 = arith.cmpi eq, %14, %15 : vector<8x32xi32>
    %cst_5 = arith.constant 0.000000e+00 : f32
    %17 = vector.broadcast %cst_5 : f32 to vector<8x32xf32>
    %18 = arith.select %16, %7, %17 : vector<8x32xi1>, vector<8x32xf32>
    %cst_6 = arith.constant dense<0.000000e+00> : vector<8xf32>
    %19 = vector.multi_reduction <add>, %18, %cst_6 [1] : vector<8x32xf32> to vector<8xf32>
    %20 = vector.shape_cast %19 : vector<8xf32> to vector<8x1xf32>
    %21 = arith.subf %20, %11 : vector<8x1xf32>
    %cst_7 = arith.constant 0.899999976 : f32
    %22 = vector.broadcast %cst_7 : f32 to vector<8x1xf32>
    %23 = arith.mulf %22, %21 : vector<8x1xf32>
    %cst_8 = arith.constant 1.000000e+00 : f32
    %24 = vector.broadcast %cst_8 : f32 to vector<8x1xf32>
    %25 = arith.subf %24, %23 : vector<8x1xf32>
    %cst_9 = arith.constant dense<0.000000e+00> : vector<8xf32>
    %26 = vector.multi_reduction <add>, %7, %cst_9 [1] : vector<8x32xf32> to vector<8xf32>
    %27 = vector.shape_cast %26 : vector<8xf32> to vector<8x1xf32>
    %cst_10 = arith.constant 3.200000e+01 : f32
    %28 = vector.broadcast %cst_10 : f32 to vector<8x1xf32>
    %29 = arith.mulf %28, %11 : vector<8x1xf32>
    %30 = arith.subf %27, %29 : vector<8x1xf32>
    %cst_11 = arith.constant 3.125000e-03 : f32
    %31 = vector.broadcast %cst_11 : f32 to vector<8x1xf32>
    %32 = arith.mulf %31, %30 : vector<8x1xf32>
    %33 = arith.subf %25, %32 : vector<8x1xf32>
    %c1_i32 = arith.constant 1 : i32
    %34 = arith.muli %arg0, %c1_i32 : i32
    %35 = arith.addi %34, %arg1 : i32
    %c8_i32 = arith.constant 8 : i32
    %36 = arith.muli %35, %c8_i32 : i32
    %37 = tpu.iota {dimensions = array<i32: 0>} : vector<8x1xi32>
    %38 = vector.broadcast %36 : i32 to vector<8x1xi32>
    %39 = arith.addi %37, %38 : vector<8x1xi32>
    %c8_i32_12 = arith.constant 8 : i32
    %40 = vector.broadcast %c8_i32_12 : i32 to vector<8x1xi32>
    %41 = arith.cmpi slt, %39, %40 : vector<8x1xi32>
    %cst_13 = arith.constant 0.000000e+00 : f32
    %42 = vector.broadcast %cst_13 : f32 to vector<8x1xf32>
    %43 = arith.select %41, %33, %42 : vector<8x1xi1>, vector<8x1xf32>
    %c0_14 = arith.constant 0 : index
    %44 = memref.load %arg5[%c0_14] : memref<1xf32, #tpu.memory_space<smem>>
    %45 = vector.shape_cast %43 : vector<8x1xf32> to vector<1x8x1xf32>
    %cst_15 = arith.constant dense<0.000000e+00> : vector<1xf32>
    %46 = vector.multi_reduction <add>, %45, %cst_15 [1, 2] : vector<1x8x1xf32> to vector<1xf32>
    %47 = vector.shape_cast %46 : vector<1xf32> to vector<1x1x1xf32>
    %48 = vector.extract %47[0, 0, 0] : f32 from vector<1x1x1xf32>
    %49 = arith.addf %44, %48 : f32
    %c0_16 = arith.constant 0 : index
    %50 = memref.load %arg5[%c0_16] : memref<1xf32, #tpu.memory_space<smem>>
    memref.store %49, %arg5[%c0_16] : memref<1xf32, #tpu.memory_space<smem>>
    %c0_i32_17 = arith.constant 0 : i32
    %51 = arith.cmpi eq, %arg1, %c0_i32_17 : i32
    %52 = arith.extui %51 : i1 to i32
    %c0_i32_18 = arith.constant 0 : i32
    %53 = arith.cmpi ne, %52, %c0_i32_18 : i32
    scf.if %53 {
      %c0_19 = arith.constant 0 : index
      %54 = memref.load %arg5[%c0_19] : memref<1xf32, #tpu.memory_space<smem>>
      %55 = vector.broadcast %54 : f32 to vector<1x8x128xf32>
      %c0_20 = arith.constant 0 : index
      %c0_21 = arith.constant 0 : index
      %c0_22 = arith.constant 0 : index
      %56 = vector.load %arg4[%c0_20, %c0_21, %c0_22] : memref<1x8x128xf32, #tpu.memory_space<vmem>>, vector<1x8x128xf32>
      tpu.vector_store %arg4[%c0_20, %c0_21, %c0_22], %55 {strides = array<i32>} : memref<1x8x128xf32, #tpu.memory_space<vmem>>, vector<1x8x128xf32>,
    } else {
    }
    return
  }
  func.func @transform_0(%arg0: i32, %arg1: i32) -> (i32, i32) {
    %c1_i32 = arith.constant 1 : i32
    %0 = arith.muli %arg0, %c1_i32 : i32
    %1 = arith.addi %0, %arg1 : i32
    %c0_i32 = arith.constant 0 : i32
    %2 = arith.minsi %1, %c0_i32 : i32
    %c0_i32_0 = arith.constant 0 : i32
    %c0_i32_1 = arith.constant 0 : i32
    return %2, %c0_i32_0 : i32, i32
  }
  func.func @transform_1(%arg0: i32, %arg1: i32) -> (i32, i32) {
    %c1_i32 = arith.constant 1 : i32
    %0 = arith.muli %arg0, %c1_i32 : i32
    %1 = arith.addi %0, %arg1 : i32
    %c0_i32 = arith.constant 0 : i32
    %2 = arith.minsi %1, %c0_i32 : i32
    %c0_i32_0 = arith.constant 0 : i32
    %c0_i32_1 = arith.constant 0 : i32
    return %2, %c0_i32_0 : i32, i32
  }
  func.func @transform_2(%arg0: i32, %arg1: i32) -> (i32, i32, i32) {
    %c0_i32 = arith.constant 0 : i32
    %c0_i32_0 = arith.constant 0 : i32
    %c0_i32_1 = arith.constant 0 : i32
    return %arg0, %c0_i32, %c0_i32_0 : i32, i32, i32
  }
}

</mosaic_0001>

<llo_original>
// kernel: tpu_custom_call.1
$region0: #{tpu_custom_call.1}
  #allocation0 [shape = 'u32[]', space=smem, size = 0x4, offset = 0x4, fixed_abs, tag = 'smem constant byte address 0x4 - core index']
  #allocation1 [shape = 'u32[144,128]{1,0:T(1,128)}', space=vmem, size = 0x12000, scoped, tag = 'internal scratch']
  #allocation2 [shape = 'f32[1]{0:T(128)}', space=smem, size = 0x200, scoped, tag = 'scratch operand']
  %s0 = inlined_call_operand.vmem [shape: f32[8,32], index: 0, kind: input, shape index: {}]
  %s1 = inlined_call_operand.vmem [shape: s32[8,1], index: 1, kind: input, shape index: {}]
  %s2 = inlined_call_operand.hbm [shape: f32[1,8,128], index: 2, kind: output, shape index: {}]
  %s3 = sld [smem:[#allocation0]]
  $region26: #{tpu_custom_call.1} parent=0
    _
  %s5 = ssub.s32 1, %s3
  %s6 = scalar_select 0, %s5, %s3
  $region1: #{tpu_custom_call.1} parent=0
    #allocation3 [shape = 'u8[4096]{0}', space=vmem, size = 0x1000, scoped, tag = 'output window, operand 0, single buffered']
    #allocation4 [shape = 's32[1]{0}', space=sflag, size = 0x4, scoped, tag = 'scoped memory for tpu_custom_call.1']
    %7 = vsyncpa [#allocation4], 0
    // Predicated region
    $region2: #{tpu_custom_call.1} parent=1 // pred_check
      _
    $region3: #{tpu_custom_call.1} parent=1 // pred_check_branch
      %9 = sbr.rel (0) target = $region5
    $region4: #{tpu_custom_call.1} parent=1 // pred_region
      %s10 = sadd.s32 0, 0
      %p11 = scmp.lt.s32.totalorder %s10, 0
      %s12 = scalar_select %p11, %s10, 0
      %p13 = scmp.lt.s32.totalorder %s12, 0
      %s14 = scalar_select %p13, %s12, 0
      %s15 = smul.addr %s14, 8
      %s16 = scalar_lea.vmem %s0, %s15
      %s17 = sadd.s32 0, 0
      %p18 = scmp.lt.s32.totalorder %s17, 0
      %s19 = scalar_select %p18, %s17, 0
    $region5: #{tpu_custom_call.1} parent=1 // pred_fallthru
      _
    // Predicated region
    $region6: #{tpu_custom_call.1} parent=1 // pred_check
      _
    $region7: #{tpu_custom_call.1} parent=1 // pred_check_branch
      %21 = sbr.rel (0) target = $region9
    $region8: #{tpu_custom_call.1} parent=1 // pred_region
      %s22 = sadd.s32 0, 0
      %p23 = scmp.lt.s32.totalorder %s22, 0
      %s24 = scalar_select %p23, %s22, 0
      %p25 = scmp.lt.s32.totalorder %s24, 0
      %s26 = scalar_select %p25, %s24, 0
      %s27 = smul.addr %s26, 8
      %s28 = scalar_lea.vmem %s1, %s27
      %s29 = sadd.s32 0, 0
      %p30 = scmp.lt.s32.totalorder %s29, 0
      %s31 = scalar_select %p30, %s29, 0
    $region9: #{tpu_custom_call.1} parent=1 // pred_fallthru
      _
    %s32 = sadd.s32 0, 0
    %p33 = scmp.lt.s32.totalorder %s32, 0
    %s34 = scalar_select %p33, %s32, 0
    %p35 = scmp.lt.s32.totalorder %s34, 0
    %s36 = scalar_select %p35, %s34, 0
    %s37 = smul.addr %s36, 8
    %s38 = scalar_lea.vmem %s0, %s37
    %s39 = sadd.s32 0, 0
    %p40 = scmp.lt.s32.totalorder %s39, 0
    %s41 = scalar_select %p40, %s39, 0
    %p42 = scmp.lt.s32.totalorder %s41, 0
    %s43 = scalar_select %p42, %s41, 0
    %s44 = smul.addr %s43, 8
    %s45 = scalar_lea.vmem %s1, %s44
    %s46 = sadd.s32 0, 0
    %p47 = scmp.lt.s32.totalorder %s46, 0
    %s48 = scalar_select %p47, %s46, 0
    %p49 = scmp.lt.s32.totalorder %s48, 0
    %s50 = scalar_select %p49, %s48, 0
    %s51 = smul.addr %s50, 8
    %s52 = scalar_lea.vmem %s0, %s51
    %s53 = sadd.s32 0, 0
    %p54 = scmp.lt.s32.totalorder %s53, 0
    %s55 = scalar_select %p54, %s53, 0
    %s56 = sadd.s32 0, 0
    %p57 = scmp.lt.s32.totalorder %s56, 0
    %s58 = scalar_select %p57, %s56, 0
    %p59 = scmp.lt.s32.totalorder %s58, 0
    %s60 = scalar_select %p59, %s58, 0
    %s61 = smul.addr %s60, 8
    %s62 = scalar_lea.vmem %s1, %s61
    %s63 = sadd.s32 0, 0
    %p64 = scmp.lt.s32.totalorder %s63, 0
    %s65 = scalar_select %p64, %s63, 0
    %p66 = scmp.eq.s32.totalorder 0, 0
    // Predicated region
    $region10: #{tpu_custom_call.1} parent=1 // pred_check
      %p67 = pneg %p66
    $region11: #{tpu_custom_call.1} parent=1 // pred_check_branch
      %69 = sbr.rel (%p67) target = $region13
    $region12: #{tpu_custom_call.1} parent=1 // pred_region
      %s70 = scalar_lea.smem [#allocation2], 0
      %71 = sst [smem:[%s70]] 0.0
    $region13: #{tpu_custom_call.1} parent=1 // pred_fallthru
      _
    %v72 = vld [vmem:[%s52] sm:$0xff]
    %vm73 = vcmask 261120
    %v74 = vsel %vm73, %v72, -inf
    %75 = vmax.xlane.f32.xlu0 %v74
    %v76 = vpop.xlane.xlu0 %75
    %v77 = vsub.f32 %v72, %v76
    %v78 = vmul.f32 %v77, 1.442695
    %v79 = vpow.pop %v78
    %v80 = vsel %vm73, %v79, 0.0
    %81 = vadd.xlane.f32.xlu0 %v80
    %v82 = vpop.xlane.xlu0 %81
    %v83 = vlog2.pop %v82
    %v84 = vmul.f32 %v83, 0.6931472
    %v85 = vlaneseq
    %v86 = vand.u32 %v85, 127
    %v87 = vld [vmem:[%s62] sm:$0xff]
    %88 = vset.pattern.permute.xlu0 0
    %89 = vperm.xlu0 %88, %v87
    %v90 = vpop.permute.xlu0 %89
    %vm91 = vcmp.eq.s32.totalorder %v86, %v90
    %v92 = vsel %vm91, %v77, 0.0
    %v93 = vsel %vm73, %v92, 0.0
    %94 = vadd.xlane.f32.xlu0 %v93
    %v95 = vpop.xlane.xlu0 %94
    %v96 = vsub.f32 %v95, %v84
    %v97 = vmul.f32 %v96, 0.9
    %v98 = vsub.f32 1.0, %v97
    %v99 = vsel %vm73, %v77, 0.0
    %100 = vadd.xlane.f32.xlu0 %v99
    %v101 = vpop.xlane.xlu0 %100
    %v102 = vmul.f32 %v84, 32.0
    %v103 = vsub.f32 %v101, %v102
    %v104 = vmul.f32 %v103, 0.003125
    %v105 = vsub.f32 %v98, %v104
    %s106 = sadd.s32 0, 0
    %s107 = smul.u32 %s106, 8
    %v108 = vlaneseq
    %v109 = vshrl.u32 %v108, 7
    %v110 = vstv %s107
    %v111 = vadd.s32 %v109, %v110
    %vm112 = vcmp.lt.s32.totalorder %v111, 8
    %v113 = vsel %vm112, %v105, 0.0
    %s114 = sld [smem:[#allocation2]]
    %vm115 = vcmask 7168
    %v116 = vsel %vm115, %v113, 0.0
    %117 = vadd.xlane.f32.xlu0 %v116
    %v118 = vpop.xlane.xlu0 %117
    %v119 = vrot.slane %v118, 4
    %v120 = vadd.f32 %v118, %v119
    %v121 = vrot.slane %v120, 2
    %v122 = vadd.f32 %v120, %v121
    %v123 = vrot.slane %v122, 1
    %v124 = vadd.f32 %v122, %v123
    %s125 = vtos %v124
    %s126 = sadd.f32 %s114, %s125
    %s127 = scalar_lea.smem [#allocation2], 0
    %128 = sst [smem:[%s127]] %s126
    // Predicated region
    $region14: #{tpu_custom_call.1} parent=1 // pred_check
      %p129 = pneg %p66
    $region15: #{tpu_custom_call.1} parent=1 // pred_check_branch
      %131 = sbr.rel (%p129) target = $region17
    $region16: #{tpu_custom_call.1} parent=1 // pred_region
      %s132 = sld [smem:[#allocation2]]
      %v133 = vstv %s132
      %134 = vst [vmem:[#allocation3] sm:$0xff] %v133
    $region17: #{tpu_custom_call.1} parent=1 // pred_fallthru
      _
    // Predicated region
    $region18: #{tpu_custom_call.1} parent=1 // pred_check
      _
    $region19: #{tpu_custom_call.1} parent=1 // pred_check_branch
      %136 = sbr.rel (0) target = $region21
    $region20: #{tpu_custom_call.1} parent=1 // pred_region
      %s138 = ssub.s32 128, 128
      %139 = vsyncadd [#allocation4], %s138
      %s141 = sshll.u32 [#allocation3], 4
      %s142 = int_to_ptr.vmem [resolvable:$true] %s141
      %144 = dma.vmem_to_hbm [thread:$0]  %s142, 128, %s2, [#allocation4]
    $region21: #{tpu_custom_call.1} parent=1 // pred_fallthru
      _
    // Predicated region
    $region22: #{tpu_custom_call.1} parent=1 // pred_check
      _
    $region23: #{tpu_custom_call.1} parent=1 // pred_check_branch
      %146 = sbr.rel (0) target = $region25
    $region24: #{tpu_custom_call.1} parent=1 // pred_region
      %147 = dma.done [#allocation4], 128
    $region25: #{tpu_custom_call.1} parent=1 // pred_fallthru
      _
    %148 = vsyncpa [#allocation4], 1

</llo_original>
